<compile_context>
chip_gen: v7x
topology: tpu7x:2x2x1
jax: 0.10.0
libtpu: 0.0.40
codegen_flags: <defaults>
</compile_context>

<pallas_src>
import jax
import jax.numpy as jnp
from jax.experimental import pallas as pl
from jax.experimental.pallas import tpu as pltpu

H1 = 400            # l1 output width (logical)
H2 = 300            # l2 output width (logical)
H1P = 512           # padded, multiple of 128 (and of 256 for v6e/v7x MXU)
H2P = 384           # padded, multiple of 128
TM_MAX = 256        # batch tile rows


def _round_up(x, m):
    return (x + m - 1) // m * m


def _pad_to(x, shape):
    return jnp.pad(x, [(0, t - s) for s, t in zip(x.shape, shape)])


def critic_kernel(state_ref, action_ref,
                  w1_ref, b1_ref, w2_ref, b2_ref, w3_ref, b3_ref,
                  out_ref):
    # ---- l1 + relu : bf16 MXU matmul, f32 accumulate, f32 bias/relu -------------
    h1 = jnp.dot(state_ref[...].astype(jnp.bfloat16), w1_ref[...],
                 preferred_element_type=jnp.float32)
    h1 = jnp.maximum(h1 + b1_ref[...], 0.0)

    # ---- torch.cat([q + action], 1) == q + action (single-tensor cat) -----------
    x = h1 + action_ref[...]

    # ---- l2 + relu ---------------------------------------------------------------
    h2 = jnp.dot(x.astype(jnp.bfloat16), w2_ref[...],
                 preferred_element_type=jnp.float32)
    h2 = jnp.maximum(h2 + b2_ref[...], 0.0)

    # ---- l3 (out_features == 1): VPU multiply + XLU row-reduce.  Output stays
    # (TM, 1) to match the PyTorch interface; the narrow store is tiny.
    out_ref[...] = jnp.sum(h2 * w3_ref[...], axis=-1, keepdims=True) + b3_ref[...]


def prepare_params(params_f32):
    """Pad to lane-aligned widths and cast the matmul weights to bf16.

    Returns (w1, b1, w2, b2, w3, b3) with:
      w1: (state_dim, H1P) bf16     b1: (1, H1P) f32
      w2: (H1P, H2P)      bf16      b2: (1, H2P) f32
      w3: (1, H2P)        f32 row   b3: (1, 1)   f32
    Zero padding keeps the math exact (padded lanes compute relu(0) = 0).
    """
    w1, b1, w2, b2, w3, b3 = params_f32
    state_dim = w1.shape[0]
    w1p = _pad_to(w1, (state_dim, H1P)).astype(jnp.bfloat16)
    b1p = _pad_to(b1, (1, H1P)).astype(jnp.float32)
    w2p = _pad_to(w2, (H1P, H2P)).astype(jnp.bfloat16)
    b2p = _pad_to(b2, (1, H2P)).astype(jnp.float32)
    w3p = _pad_to(w3.T, (1, H2P)).astype(jnp.float32)   # stored as a row vector
    b3p = b3.reshape(1, 1).astype(jnp.float32)
    return w1p, b1p, w2p, b2p, w3p, b3p


def critic_forward(state, action, padded_params):
    """Fused Critic forward with a pipelined batch grid.

    state:  (B, state_dim) f32
    action: (B, H1) f32  (broadcast-added to the 400-wide hidden, see TODO above)
    """
    w1, b1, w2, b2, w3, b3 = padded_params
    B, state_dim = state.shape

    # Batch tiling: full tiles of up to 256 rows; pad the batch so every tile is
    # full and sublane-aligned (padded rows are sliced off on the way out).
    TM = min(TM_MAX, _round_up(B, 8))
    Bp = _round_up(B, TM)
    state_p = _pad_to(state.astype(jnp.float32), (Bp, state_dim))
    action_p = _pad_to(action.astype(jnp.float32), (Bp, H1P))

    grid = (Bp // TM,)
    out = pl.pallas_call(
        critic_kernel,
        out_shape=jax.ShapeDtypeStruct((Bp, 1), jnp.float32),
        grid=grid,
        in_specs=[
            # activations: tiled over the batch grid axis
            pl.BlockSpec((TM, state_dim), lambda i: (i, 0)),
            pl.BlockSpec((TM, H1P), lambda i: (i, 0)),
            # weights/biases: constant index_map -> fetched once, VMEM-resident
            pl.BlockSpec((state_dim, H1P), lambda i: (0, 0)),
            pl.BlockSpec((1, H1P), lambda i: (0, 0)),
            pl.BlockSpec((H1P, H2P), lambda i: (0, 0)),
            pl.BlockSpec((1, H2P), lambda i: (0, 0)),
            pl.BlockSpec((1, H2P), lambda i: (0, 0)),
            pl.BlockSpec((1, 1), lambda i: (0, 0)),
        ],
        out_specs=pl.BlockSpec((TM, 1), lambda i: (i, 0)),
        compiler_params=pltpu.CompilerParams(
            dimension_semantics=("parallel",)),  # shards batch tiles across TCs on v7x
    )(state_p, action_p, w1, b1, w2, b2, w3, b3)
    return out[:B]


def _linear_init(key, fan_in, fan_out):
    """Deterministic PyTorch-style init: U(-1/sqrt(fan_in), 1/sqrt(fan_in))."""
    kw, kb = jax.random.split(key)
    bound = 1.0 / jnp.sqrt(jnp.float32(fan_in))
    w = jax.random.uniform(kw, (fan_in, fan_out), jnp.float32, -bound, bound)
    b = jax.random.uniform(kb, (1, fan_out), jnp.float32, -bound, bound)
    return w, b


def _reference(state, action, params_f32):
    """Plain-JAX reference mirroring the kernel's precision (bf16 matmuls, f32 acc)."""
    w1, b1, w2, b2, w3, b3 = params_f32
    h1 = jnp.dot(state.astype(jnp.bfloat16), w1.astype(jnp.bfloat16),
                 preferred_element_type=jnp.float32) + b1
    h1 = jnp.maximum(h1, 0.0)
    x = h1 + action
    h2 = jnp.dot(x.astype(jnp.bfloat16), w2.astype(jnp.bfloat16),
                 preferred_element_type=jnp.float32) + b2
    h2 = jnp.maximum(h2, 0.0)
    return jnp.sum(h2 * w3[:, 0][None, :], axis=-1, keepdims=True) + b3


if __name__ == "__main__":
    B = 2
    state_dim = 32
    action_dim = H1   # must broadcast against the 400-wide hidden (see TODO above)

    key = jax.random.PRNGKey(0)
    k_s, k_a, k1, k2, k3 = jax.random.split(key, 5)

    state = jax.random.normal(k_s, (B, state_dim), jnp.float32)
    action = jax.random.normal(k_a, (B, action_dim), jnp.float32)

    w1, b1 = _linear_init(k1, state_dim, H1)
    w2, b2 = _linear_init(k2, H1, H2)     # in_features = 400 so the forward executes
    w3, b3 = _linear_init(k3, H2, 1)
    params_f32 = (w1, b1, w2, b2, w3, b3)
    padded_params = prepare_params(params_f32)

    out = jax.block_until_ready(critic_forward(state, action, padded_params))
    ref = _reference(state, action, params_f32)

    assert out.shape == (B, 1), out.shape
    assert jnp.allclose(out, ref, atol=1e-3, rtol=1e-3), (out, ref)

    print("KERNEL_OK")
</pallas_src>

<mosaic_0001>
module attributes {stable_mosaic.version = 11 : i64} {
  func.func @critic_kernel(%arg0: i32, %arg1: memref<8x32xf32, #tpu.memory_space<vmem>>, %arg2: memref<8x512xf32, #tpu.memory_space<vmem>>, %arg3: memref<32x512xbf16, #tpu.memory_space<vmem>>, %arg4: memref<1x512xf32, #tpu.memory_space<vmem>>, %arg5: memref<512x384xbf16, #tpu.memory_space<vmem>>, %arg6: memref<1x384xf32, #tpu.memory_space<vmem>>, %arg7: memref<1x384xf32, #tpu.memory_space<vmem>>, %arg8: memref<1x1xf32, #tpu.memory_space<vmem>>, %arg9: memref<8x1xf32, #tpu.memory_space<vmem>>) attributes {dimension_semantics = [#tpu.dimension_semantics<parallel>], iteration_bounds = array<i64: 1>, scalar_prefetch = 0 : i64, scratch_operands = 0 : i64, tpu.core_type = #tpu.core_type<tc>, window_params = [{transform_indices = @transform_0, window_bounds = array<i64: 8, 32>}, {transform_indices = @transform_1, window_bounds = array<i64: 8, 512>}, {pipeline_mode = #tpu.pipeline_mode<synchronous>, transform_indices = @transform_2, window_bounds = array<i64: 32, 512>}, {pipeline_mode = #tpu.pipeline_mode<synchronous>, transform_indices = @transform_3, window_bounds = array<i64: 1, 512>}, {pipeline_mode = #tpu.pipeline_mode<synchronous>, transform_indices = @transform_4, window_bounds = array<i64: 512, 384>}, {pipeline_mode = #tpu.pipeline_mode<synchronous>, transform_indices = @transform_5, window_bounds = array<i64: 1, 384>}, {pipeline_mode = #tpu.pipeline_mode<synchronous>, transform_indices = @transform_6, window_bounds = array<i64: 1, 384>}, {pipeline_mode = #tpu.pipeline_mode<synchronous>, transform_indices = @transform_7, window_bounds = array<i64: 1, 1>}, {transform_indices = @transform_8, window_bounds = array<i64: 8, 1>}]} {
    %c0 = arith.constant 0 : index
    %c0_0 = arith.constant 0 : index
    %0 = vector.load %arg1[%c0, %c0_0] : memref<8x32xf32, #tpu.memory_space<vmem>>, vector<8x32xf32>
    %1 = arith.truncf %0 : vector<8x32xf32> to vector<8x32xbf16>
    %c0_1 = arith.constant 0 : index
    %c0_2 = arith.constant 0 : index
    %2 = vector.load %arg3[%c0_1, %c0_2] : memref<32x512xbf16, #tpu.memory_space<vmem>>, vector<32x512xbf16>
    %cst = arith.constant dense<0.000000e+00> : vector<8x512xf32>
    %3 = tpu.matmul %1, %2, %cst {dimension_numbers = #tpu.dot_dimension_numbers<[1], [0], [0], [1], [0, 0, 1, 1], [], []>} : vector<8x32xbf16>, vector<32x512xbf16>, vector<8x512xf32> -> vector<8x512xf32>
    %c0_3 = arith.constant 0 : index
    %c0_4 = arith.constant 0 : index
    %4 = vector.load %arg4[%c0_3, %c0_4] : memref<1x512xf32, #tpu.memory_space<vmem>>, vector<1x512xf32>
    %5 = vector.broadcast %4 : vector<1x512xf32> to vector<8x512xf32>
    %6 = arith.addf %3, %5 : vector<8x512xf32>
    %cst_5 = arith.constant 0.000000e+00 : f32
    %7 = vector.broadcast %cst_5 : f32 to vector<8x512xf32>
    %8 = arith.maximumf %6, %7 : vector<8x512xf32>
    %c0_6 = arith.constant 0 : index
    %c0_7 = arith.constant 0 : index
    %9 = vector.load %arg2[%c0_6, %c0_7] : memref<8x512xf32, #tpu.memory_space<vmem>>, vector<8x512xf32>
    %10 = arith.addf %8, %9 : vector<8x512xf32>
    %11 = arith.truncf %10 : vector<8x512xf32> to vector<8x512xbf16>
    %c0_8 = arith.constant 0 : index
    %c0_9 = arith.constant 0 : index
    %12 = vector.load %arg5[%c0_8, %c0_9] : memref<512x384xbf16, #tpu.memory_space<vmem>>, vector<512x384xbf16>
    %cst_10 = arith.constant dense<0.000000e+00> : vector<8x384xf32>
    %13 = tpu.matmul %11, %12, %cst_10 {dimension_numbers = #tpu.dot_dimension_numbers<[1], [0], [0], [1], [0, 0, 1, 1], [], []>} : vector<8x512xbf16>, vector<512x384xbf16>, vector<8x384xf32> -> vector<8x384xf32>
    %c0_11 = arith.constant 0 : index
    %c0_12 = arith.constant 0 : index
    %14 = vector.load %arg6[%c0_11, %c0_12] : memref<1x384xf32, #tpu.memory_space<vmem>>, vector<1x384xf32>
    %15 = vector.broadcast %14 : vector<1x384xf32> to vector<8x384xf32>
    %16 = arith.addf %13, %15 : vector<8x384xf32>
    %cst_13 = arith.constant 0.000000e+00 : f32
    %17 = vector.broadcast %cst_13 : f32 to vector<8x384xf32>
    %18 = arith.maximumf %16, %17 : vector<8x384xf32>
    %c0_14 = arith.constant 0 : index
    %c0_15 = arith.constant 0 : index
    %19 = vector.load %arg7[%c0_14, %c0_15] : memref<1x384xf32, #tpu.memory_space<vmem>>, vector<1x384xf32>
    %20 = vector.broadcast %19 : vector<1x384xf32> to vector<8x384xf32>
    %21 = arith.mulf %18, %20 : vector<8x384xf32>
    %cst_16 = arith.constant dense<0.000000e+00> : vector<8xf32>
    %22 = vector.multi_reduction <add>, %21, %cst_16 [1] : vector<8x384xf32> to vector<8xf32>
    %23 = vector.shape_cast %22 : vector<8xf32> to vector<8x1xf32>
    %c0_17 = arith.constant 0 : index
    %c0_18 = arith.constant 0 : index
    %24 = vector.load %arg8[%c0_17, %c0_18] : memref<1x1xf32, #tpu.memory_space<vmem>>, vector<1x1xf32>
    %25 = vector.broadcast %24 : vector<1x1xf32> to vector<8x1xf32>
    %26 = arith.addf %23, %25 : vector<8x1xf32>
    %c0_19 = arith.constant 0 : index
    %c0_20 = arith.constant 0 : index
    %27 = vector.load %arg9[%c0_19, %c0_20] : memref<8x1xf32, #tpu.memory_space<vmem>>, vector<8x1xf32>
    tpu.vector_store %arg9[%c0_19, %c0_20], %26 {strides = array<i32>} : memref<8x1xf32, #tpu.memory_space<vmem>>, vector<8x1xf32>,
    return
  }
  func.func @transform_0(%arg0: i32) -> (i32, i32) {
    %c0_i32 = arith.constant 0 : i32
    %c0_i32_0 = arith.constant 0 : i32
    return %arg0, %c0_i32 : i32, i32
  }
  func.func @transform_1(%arg0: i32) -> (i32, i32) {
    %c0_i32 = arith.constant 0 : i32
    %c0_i32_0 = arith.constant 0 : i32
    return %arg0, %c0_i32 : i32, i32
  }
  func.func @transform_2(%arg0: i32) -> (i32, i32) {
    %c0_i32 = arith.constant 0 : i32
    %c0_i32_0 = arith.constant 0 : i32
    %c0_i32_1 = arith.constant 0 : i32
    return %c0_i32, %c0_i32_0 : i32, i32
  }
  func.func @transform_3(%arg0: i32) -> (i32, i32) {
    %c0_i32 = arith.constant 0 : i32
    %c0_i32_0 = arith.constant 0 : i32
    %c0_i32_1 = arith.constant 0 : i32
    return %c0_i32, %c0_i32_0 : i32, i32
  }
  func.func @transform_4(%arg0: i32) -> (i32, i32) {
    %c0_i32 = arith.constant 0 : i32
    %c0_i32_0 = arith.constant 0 : i32
    %c0_i32_1 = arith.constant 0 : i32
    return %c0_i32, %c0_i32_0 : i32, i32
  }
  func.func @transform_5(%arg0: i32) -> (i32, i32) {
    %c0_i32 = arith.constant 0 : i32
    %c0_i32_0 = arith.constant 0 : i32
    %c0_i32_1 = arith.constant 0 : i32
    return %c0_i32, %c0_i32_0 : i32, i32
  }
  func.func @transform_6(%arg0: i32) -> (i32, i32) {
    %c0_i32 = arith.constant 0 : i32
    %c0_i32_0 = arith.constant 0 : i32
    %c0_i32_1 = arith.constant 0 : i32
    return %c0_i32, %c0_i32_0 : i32, i32
  }
  func.func @transform_7(%arg0: i32) -> (i32, i32) {
    %c0_i32 = arith.constant 0 : i32
    %c0_i32_0 = arith.constant 0 : i32
    %c0_i32_1 = arith.constant 0 : i32
    return %c0_i32, %c0_i32_0 : i32, i32
  }
  func.func @transform_8(%arg0: i32) -> (i32, i32) {
    %c0_i32 = arith.constant 0 : i32
    %c0_i32_0 = arith.constant 0 : i32
    return %arg0, %c0_i32 : i32, i32
  }
}

</mosaic_0001>

<llo_original>
// kernel: tpu_custom_call.1
$region0: #{tpu_custom_call.1}
  #allocation0 [shape = 'u32[]', space=smem, size = 0x4, offset = 0x4, fixed_abs, tag = 'smem constant byte address 0x4 - core index']
  #allocation1 [shape = 'u32[144,128]{1,0:T(1,128)}', space=vmem, size = 0x12000, scoped, tag = 'internal scratch']
  #allocation2 [shape = 'f32[1,1]{1,0:T(1,128)S(1)}', space=vmem, size = 0x200, scoped, tag = 'scoped memory for tpu_custom_call.1']
  %s0 = inlined_call_operand.hbm [shape: f32[8,32], index: 0, kind: input, shape index: {}]
  %s1 = inlined_call_operand.hbm [shape: f32[8,512], index: 1, kind: input, shape index: {}]
  %s2 = inlined_call_operand.hbm [shape: bf16[32,512], index: 2, kind: input, shape index: {}]
  %s3 = inlined_call_operand.vmem [shape: f32[1,512], index: 3, kind: input, shape index: {}]
  %s4 = inlined_call_operand.hbm [shape: bf16[512,384], index: 4, kind: input, shape index: {}]
  %s5 = inlined_call_operand.vmem [shape: f32[1,384], index: 5, kind: input, shape index: {}]
  %s6 = inlined_call_operand.vmem [shape: f32[1,384], index: 6, kind: input, shape index: {}]
  %s7 = inlined_call_operand.<no memory space> [shape: f32[1,1], index: 7, kind: input, shape index: {}]
  %s8 = inlined_call_operand.vmem [shape: f32[8,1], index: 8, kind: output, shape index: {}]
  %s9 = sld [smem:[#allocation0]]
  $region58: #{tpu_custom_call.1} parent=0
    _
  %s11 = ssub.s32 1, %s9
  %s12 = scalar_select 0, %s11, %s9
  %v13 = vstv %s7
  %14 = vst [vmem:[#allocation2] sm:$0x1] %v13
  $region1: #{tpu_custom_call.1} parent=0
    #allocation3 [shape = 'u8[4096]{0}', space=vmem, size = 0x1000, scoped, tag = 'input window, operand 0, single buffered']
    #allocation4 [shape = 's32[1]{0}', space=sflag, size = 0x4, scoped, tag = 'scoped memory for tpu_custom_call.1']
    #allocation5 [shape = 'u8[16384]{0}', space=vmem, size = 0x4000, scoped, tag = 'input window, operand 1, single buffered']
    #allocation6 [shape = 's32[1]{0}', space=sflag, size = 0x4, scoped, tag = 'scoped memory for tpu_custom_call.1']
    #allocation7 [shape = 'u8[32768]{0}', space=vmem, size = 0x8000, scoped, tag = 'input window, operand 2, single buffered']
    #allocation8 [shape = 'u8[393216]{0}', space=vmem, size = 0x60000, scoped, tag = 'input window, operand 4, single buffered']
    #allocation9 [shape = 's32[1]{0}', space=sflag, size = 0x4, scoped, tag = 'scoped memory for tpu_custom_call.1']
    %15 = vsyncpa [#allocation4], 0
    %16 = vsyncpa [#allocation6], 0
    %17 = vsyncpa [#allocation9], 0
    // Predicated region
    $region2: #{tpu_custom_call.1} parent=1 // pred_check
      _
    $region3: #{tpu_custom_call.1} parent=1 // pred_check_branch
      %19 = sbr.rel (0) target = $region5
    $region4: #{tpu_custom_call.1} parent=1 // pred_region
      %s21 = ssub.s32 128, 128
      %22 = vsyncadd [#allocation4], %s21
      %s24 = sshll.u32 [#allocation3], 4
      %s25 = int_to_ptr.vmem [resolvable:$true] %s24
      %27 = dma.hbm_to_vmem [thread:$0]  %s0, 128, %s25, [#allocation4]
    $region5: #{tpu_custom_call.1} parent=1 // pred_fallthru
      _
    // Predicated region
    $region6: #{tpu_custom_call.1} parent=1 // pred_check
      _
    $region7: #{tpu_custom_call.1} parent=1 // pred_check_branch
      %29 = sbr.rel (0) target = $region9
    $region8: #{tpu_custom_call.1} parent=1 // pred_region
      %s31 = ssub.s32 512, 512
      %32 = vsyncadd [#allocation6], %s31
      %s34 = sshll.u32 [#allocation5], 4
      %s35 = int_to_ptr.vmem [resolvable:$true] %s34
      %37 = dma.hbm_to_vmem [thread:$0]  %s1, 512, %s35, [#allocation6]
    $region9: #{tpu_custom_call.1} parent=1 // pred_fallthru
      _
    // Predicated region
    $region10: #{tpu_custom_call.1} parent=1 // pred_check
      _
    $region11: #{tpu_custom_call.1} parent=1 // pred_check_branch
      %39 = sbr.rel (0) target = $region13
    $region12: #{tpu_custom_call.1} parent=1 // pred_region
      %s41 = ssub.s32 1024, 1024
      %42 = vsyncadd [#allocation6], %s41
      %s43 = sshll.u32 [#allocation7], 4
      %s44 = int_to_ptr.vmem [resolvable:$true] %s43
      %49 = dma.hbm_to_vmem [thread:$0]  %s2, 1024, %s44, [#allocation6], 256, 256, 16
    $region13: #{tpu_custom_call.1} parent=1 // pred_fallthru
      _
    // Predicated region
    $region14: #{tpu_custom_call.1} parent=1 // pred_check
      _
    $region15: #{tpu_custom_call.1} parent=1 // pred_check_branch
      %51 = sbr.rel (0) target = $region17
    $region16: #{tpu_custom_call.1} parent=1 // pred_region
      _
    $region17: #{tpu_custom_call.1} parent=1 // pred_fallthru
      _
    // Predicated region
    $region18: #{tpu_custom_call.1} parent=1 // pred_check
      _
    $region19: #{tpu_custom_call.1} parent=1 // pred_check_branch
      %53 = sbr.rel (0) target = $region21
    $region20: #{tpu_custom_call.1} parent=1 // pred_region
      %s55 = ssub.s32 12288, 12288
      %56 = vsyncadd [#allocation9], %s55
      %s57 = sshll.u32 [#allocation8], 4
      %s58 = int_to_ptr.vmem [resolvable:$true] %s57
      %63 = dma.hbm_to_vmem [thread:$0]  %s4, 12288, %s58, [#allocation9], 192, 192, 12
    $region21: #{tpu_custom_call.1} parent=1 // pred_fallthru
      _
    // Predicated region
    $region22: #{tpu_custom_call.1} parent=1 // pred_check
      _
    $region23: #{tpu_custom_call.1} parent=1 // pred_check_branch
      %65 = sbr.rel (0) target = $region25
    $region24: #{tpu_custom_call.1} parent=1 // pred_region
      _
    $region25: #{tpu_custom_call.1} parent=1 // pred_fallthru
      _
    // Predicated region
    $region26: #{tpu_custom_call.1} parent=1 // pred_check
      _
    $region27: #{tpu_custom_call.1} parent=1 // pred_check_branch
      %67 = sbr.rel (0) target = $region29
    $region28: #{tpu_custom_call.1} parent=1 // pred_region
      _
    $region29: #{tpu_custom_call.1} parent=1 // pred_fallthru
      _
    // Predicated region
    $region30: #{tpu_custom_call.1} parent=1 // pred_check
      _
    $region31: #{tpu_custom_call.1} parent=1 // pred_check_branch
      %69 = sbr.rel (0) target = $region33
    $region32: #{tpu_custom_call.1} parent=1 // pred_region
      _
    $region33: #{tpu_custom_call.1} parent=1 // pred_fallthru
      _
    // Predicated region
    $region34: #{tpu_custom_call.1} parent=1 // pred_check
      _
    $region35: #{tpu_custom_call.1} parent=1 // pred_check_branch
      %71 = sbr.rel (0) target = $region37
    $region36: #{tpu_custom_call.1} parent=1 // pred_region
      %72 = dma.done [#allocation4], 128
    $region37: #{tpu_custom_call.1} parent=1 // pred_fallthru
      _
    // Predicated region
    $region38: #{tpu_custom_call.1} parent=1 // pred_check
      _
    $region39: #{tpu_custom_call.1} parent=1 // pred_check_branch
      %74 = sbr.rel (0) target = $region41
    $region40: #{tpu_custom_call.1} parent=1 // pred_region
      %75 = dma.done [#allocation6], 512
    $region41: #{tpu_custom_call.1} parent=1 // pred_fallthru
      _
    // Predicated region
    $region42: #{tpu_custom_call.1} parent=1 // pred_check
      _
    $region43: #{tpu_custom_call.1} parent=1 // pred_check_branch
      %77 = sbr.rel (0) target = $region45
    $region44: #{tpu_custom_call.1} parent=1 // pred_region
      %78 = dma.done [#allocation6], 1024
    $region45: #{tpu_custom_call.1} parent=1 // pred_fallthru
      _
    // Predicated region
    $region46: #{tpu_custom_call.1} parent=1 // pred_check
      _
    $region47: #{tpu_custom_call.1} parent=1 // pred_check_branch
      %80 = sbr.rel (0) target = $region49
    $region48: #{tpu_custom_call.1} parent=1 // pred_region
      %81 = dma.done [#allocation9], 12288
    $region49: #{tpu_custom_call.1} parent=1 // pred_fallthru
      _
    %v83 = vld [vmem:[#allocation3] sm:$0xff]
    %v84 = vpack.c.bf16 %v83, %v83
    %v85 = vld [vmem:[#allocation7] sm:$0xff]
    %v86 = vld [vmem:[#allocation7 + $0x8] sm:$0xff]
    %v87 = vld [vmem:[#allocation7 + $0x10] sm:$0xff]
    %v88 = vld [vmem:[#allocation7 + $0x18] sm:$0xff]
    %v89 = vld [vmem:[#allocation7 + $0x20] sm:$0xff]
    %v90 = vld [vmem:[#allocation7 + $0x28] sm:$0xff]
    %v91 = vld [vmem:[#allocation7 + $0x30] sm:$0xff]
    %v92 = vld [vmem:[#allocation7 + $0x38] sm:$0xff]
    %v93 = vld [vmem:[%s3] sm:$0xf]
    %v95 = vlaneseq
    %v96 = vshrl.u32 %v95, 7
    %v97 = vsub.s32 0, %v96
    %v98 = vrot.slane %v93, %v97
    %v99 = vlaneseq
    %v100 = vshrl.u32 %v99, 7
    %v101 = vsub.s32 1, %v100
    %v102 = vrot.slane %v93, %v101
    %v103 = vlaneseq
    %v104 = vshrl.u32 %v103, 7
    %v105 = vsub.s32 2, %v104
    %v106 = vrot.slane %v93, %v105
    %v107 = vlaneseq
    %v108 = vshrl.u32 %v107, 7
    %v109 = vsub.s32 3, %v108
    %v110 = vrot.slane %v93, %v109
    %v123 = vunpack.c.l.b16 %v85
    %v124 = vunpack.c.h.b16 %v85
    %v125 = vunpack.c.l.b16 %v86
    %v126 = vunpack.c.h.b16 %v86
    %v127 = vunpack.c.l.b16 %v87
    %v128 = vunpack.c.h.b16 %v87
    %v129 = vunpack.c.l.b16 %v88
    %v130 = vunpack.c.h.b16 %v88
    %v131 = vunpack.c.l.b16 %v89
    %v132 = vunpack.c.h.b16 %v89
    %v133 = vunpack.c.l.b16 %v90
    %v134 = vunpack.c.h.b16 %v90
    %v135 = vunpack.c.l.b16 %v91
    %v136 = vunpack.c.h.b16 %v91
    %v137 = vunpack.c.l.b16 %v92
    %v138 = vunpack.c.h.b16 %v92
    %v139 = vpack.c.b16 %v127, %v123
    %v140 = vpack.c.b16 %v128, %v124
    %v141 = vpack.c.b16 %v129, %v125
    %v142 = vpack.c.b16 %v130, %v126
    %v143 = vpack.c.b16 %v135, %v131
    %v144 = vpack.c.b16 %v136, %v132
    %v145 = vpack.c.b16 %v137, %v133
    %v146 = vpack.c.b16 %v138, %v134
    %vm155 = vcmask 261120
    %v157 = vsel %vm155, %v84, 0
    %159 = vmatprep.subr.bf16.mxu0 %v140
    %160 = vmatpush1.bf16.msra.mxu0 %v139
    %161 = vmatprep.subr.bf16.mxu0 %v144
    %162 = vmatpush1.bf16.msra.mxu0 %v143
    %163 = vmatprep.subr.bf16.mxu0 0
    %164 = vmatpush1.bf16.msra.mxu0 0
    %165 = vmatprep.subr.bf16.mxu0 0
    %166 = vmatpush1.bf16.msra.mxu0 0
    %167 = vmatprep.subr.bf16.mxu0 0
    %168 = vmatpush1.bf16.msra.mxu0 0
    %169 = vmatprep.subr.bf16.mxu0 0
    %170 = vmatpush1.bf16.msra.mxu0 0
    %171 = vmatprep.subr.bf16.mxu0 0
    %172 = vmatpush1.bf16.msra.mxu0 0
    %173 = vmatprep.subr.bf16.mxu0 0
    %174 = vmatpush1.bf16.msra.mxu0 0
    %175 = vmatprep.subr.bf16.mxu0 0
    %176 = vmatpush1.bf16.msra.mxu0 0
    %177 = vmatprep.subr.bf16.mxu0 0
    %178 = vmatpush1.bf16.msra.mxu0 0
    %179 = vmatprep.subr.bf16.mxu0 0
    %180 = vmatpush1.bf16.msra.mxu0 0
    %181 = vmatprep.subr.bf16.mxu0 0
    %182 = vmatpush1.bf16.msra.mxu0 0
    %183 = vmatprep.subr.bf16.mxu0 0
    %184 = vmatpush1.bf16.msra.mxu0 0
    %185 = vmatprep.subr.bf16.mxu0 0
    %186 = vmatpush1.bf16.msra.mxu0 0
    %187 = vmatprep.subr.bf16.mxu0 0
    %188 = vmatpush1.bf16.msra.mxu0 0
    %189 = vmatprep.subr.bf16.mxu0 0
    %190 = vmatpush1.bf16.msra.mxu0 0
    %191 = vmatprep.mubr.bf16.mxu0 0
    %192 = vmatmul.mubr.bf16.gmra.mrb[0].mxu0 %v157
    %v193 = vpop.f32.mrb[0].mxu0
    %v194 = vadd.f32 %v98, %v193
    %v195 = vpop.f32.mrb[0].mxu0
    %v196 = vadd.f32 %v102, %v195
    %v197 = vpop.f32.mrb[0].mxu0
    %v198 = vpop.f32.mrb[0].mxu0
    %199 = vdwg.mxu0
    %200 = vmatprep.subr.bf16.mxu0 %v142
    %201 = vmatpush1.bf16.msra.mxu0 %v141
    %202 = vmatprep.subr.bf16.mxu0 %v146
    %203 = vmatpush1.bf16.msra.mxu0 %v145
    %204 = vmatprep.subr.bf16.mxu0 0
    %205 = vmatpush1.bf16.msra.mxu0 0
    %206 = vmatprep.subr.bf16.mxu0 0
    %207 = vmatpush1.bf16.msra.mxu0 0
    %208 = vmatprep.subr.bf16.mxu0 0
    %209 = vmatpush1.bf16.msra.mxu0 0
    %210 = vmatprep.subr.bf16.mxu0 0
    %211 = vmatpush1.bf16.msra.mxu0 0
    %212 = vmatprep.subr.bf16.mxu0 0
    %213 = vmatpush1.bf16.msra.mxu0 0
    %214 = vmatprep.subr.bf16.mxu0 0
    %215 = vmatpush1.bf16.msra.mxu0 0
    %216 = vmatprep.subr.bf16.mxu0 0
    %217 = vmatpush1.bf16.msra.mxu0 0
    %218 = vmatprep.subr.bf16.mxu0 0
    %219 = vmatpush1.bf16.msra.mxu0 0
    %220 = vmatprep.subr.bf16.mxu0 0
    %221 = vmatpush1.bf16.msra.mxu0 0
    %222 = vmatprep.subr.bf16.mxu0 0
    %223 = vmatpush1.bf16.msra.mxu0 0
    %224 = vmatprep.subr.bf16.mxu0 0
    %225 = vmatpush1.bf16.msra.mxu0 0
    %226 = vmatprep.subr.bf16.mxu0 0
    %227 = vmatpush1.bf16.msra.mxu0 0
    %228 = vmatprep.subr.bf16.mxu0 0
    %229 = vmatpush1.bf16.msra.mxu0 0
    %230 = vmatprep.subr.bf16.mxu0 0
    %231 = vmatpush1.bf16.msra.mxu0 0
    %232 = vmatprep.mubr.bf16.mxu0 0
    %233 = vmatmul.mubr.bf16.gmra.mrb[0].mxu0 %v157
    %v234 = vpop.f32.mrb[0].mxu0
    %v235 = vadd.f32 %v106, %v234
    %v236 = vpop.f32.mrb[0].mxu0
    %v237 = vadd.f32 %v110, %v236
    %v238 = vpop.f32.mrb[0].mxu0
    %v239 = vpop.f32.mrb[0].mxu0
    %240 = vdwg.mxu0
    %v241 = vmax.f32 %v194, 0.0
    %v242 = vmax.f32 %v196, 0.0
    %v243 = vmax.f32 %v235, 0.0
    %v244 = vmax.f32 %v237, 0.0
    %v245 = vld [vmem:[#allocation5] sm:$0xff]
    %v246 = vld [vmem:[#allocation5 + $0x8] sm:$0xff]
    %v247 = vld [vmem:[#allocation5 + $0x10] sm:$0xff]
    %v248 = vld [vmem:[#allocation5 + $0x18] sm:$0xff]
    %v249 = vadd.f32 %v241, %v245
    %v250 = vadd.f32 %v242, %v246
    %v251 = vadd.f32 %v243, %v247
    %v252 = vadd.f32 %v244, %v248
    %v253 = vpack.c.bf16 %v249, %v249
    %v254 = vpack.c.bf16 %v250, %v250
    %v255 = vpack.c.bf16 %v251, %v251
    %v256 = vpack.c.bf16 %v252, %v252
    %v257 = vld [vmem:[#allocation8] sm:$0xff]
    %v258 = vld [vmem:[#allocation8 + $0x8] sm:$0xf]
    %v259 = vld [vmem:[#allocation8 + $0xc] sm:$0xff]
    %v260 = vld [vmem:[#allocation8 + $0x14] sm:$0xf]
    %v261 = vld [vmem:[#allocation8 + $0x18] sm:$0xff]
    %v262 = vld [vmem:[#allocation8 + $0x20] sm:$0xf]
    %v263 = vld [vmem:[#allocation8 + $0x24] sm:$0xff]
    %v264 = vld [vmem:[#allocation8 + $0x2c] sm:$0xf]
    %v265 = vld [vmem:[#allocation8 + $0x30] sm:$0xff]
    %v266 = vld [vmem:[#allocation8 + $0x38] sm:$0xf]
    %v267 = vld [vmem:[#allocation8 + $0x3c] sm:$0xff]
    %v268 = vld [vmem:[#allocation8 + $0x44] sm:$0xf]
    %v269 = vld [vmem:[#allocation8 + $0x48] sm:$0xff]
    %v270 = vld [vmem:[#allocation8 + $0x50] sm:$0xf]
    %v271 = vld [vmem:[#allocation8 + $0x54] sm:$0xff]
    %v272 = vld [vmem:[#allocation8 + $0x5c] sm:$0xf]
    %v273 = vld [vmem:[#allocation8 + $0x60] sm:$0xff]
    %v274 = vld [vmem:[#allocation8 + $0x68] sm:$0xf]
    %v275 = vld [vmem:[#allocation8 + $0x6c] sm:$0xff]
    %v276 = vld [vmem:[#allocation8 + $0x74] sm:$0xf]
    %v277 = vld [vmem:[#allocation8 + $0x78] sm:$0xff]
    %v278 = vld [vmem:[#allocation8 + $0x80] sm:$0xf]
    %v279 = vld [vmem:[#allocation8 + $0x84] sm:$0xff]
    %v280 = vld [vmem:[#allocation8 + $0x8c] sm:$0xf]
    %v281 = vld [vmem:[#allocation8 + $0x90] sm:$0xff]
    %v282 = vld [vmem:[#allocation8 + $0x98] sm:$0xf]
    %v283 = vld [vmem:[#allocation8 + $0x9c] sm:$0xff]
    %v284 = vld [vmem:[#allocation8 + $0xa4] sm:$0xf]
    %v285 = vld [vmem:[#allocation8 + $0xa8] sm:$0xff]
    %v286 = vld [vmem:[#allocation8 + $0xb0] sm:$0xf]
    %v287 = vld [vmem:[#allocation8 + $0xb4] sm:$0xff]
    %v288 = vld [vmem:[#allocation8 + $0xbc] sm:$0xf]
    %v289 = vld [vmem:[#allocation8 + $0xc0] sm:$0xff]
    %v290 = vld [vmem:[#allocation8 + $0xc8] sm:$0xf]
    %v291 = vld [vmem:[#allocation8 + $0xcc] sm:$0xff]
    %v292 = vld [vmem:[#allocation8 + $0xd4] sm:$0xf]
    %v293 = vld [vmem:[#allocation8 + $0xd8] sm:$0xff]
    %v294 = vld [vmem:[#allocation8 + $0xe0] sm:$0xf]
    %v295 = vld [vmem:[#allocation8 + $0xe4] sm:$0xff]
    %v296 = vld [vmem:[#allocation8 + $0xec] sm:$0xf]
    %v297 = vld [vmem:[#allocation8 + $0xf0] sm:$0xff]
    %v298 = vld [vmem:[#allocation8 + $0xf8] sm:$0xf]
    %v299 = vld [vmem:[#allocation8 + $0xfc] sm:$0xff]
    %v300 = vld [vmem:[#allocation8 + $0x104] sm:$0xf]
    %v301 = vld [vmem:[#allocation8 + $0x108] sm:$0xff]
    %v302 = vld [vmem:[#allocation8 + $0x110] sm:$0xf]
    %v303 = vld [vmem:[#allocation8 + $0x114] sm:$0xff]
    %v304 = vld [vmem:[#allocation8 + $0x11c] sm:$0xf]
    %v305 = vld [vmem:[#allocation8 + $0x120] sm:$0xff]
    %v306 = vld [vmem:[#allocation8 + $0x128] sm:$0xf]
    %v307 = vld [vmem:[#allocation8 + $0x12c] sm:$0xff]
    %v308 = vld [vmem:[#allocation8 + $0x134] sm:$0xf]
    %v309 = vld [vmem:[#allocation8 + $0x138] sm:$0xff]
    %v310 = vld [vmem:[#allocation8 + $0x140] sm:$0xf]
    %v311 = vld [vmem:[#allocation8 + $0x144] sm:$0xff]
    %v312 = vld [vmem:[#allocation8 + $0x14c] sm:$0xf]
    %v313 = vld [vmem:[#allocation8 + $0x150] sm:$0xff]
    %v314 = vld [vmem:[#allocation8 + $0x158] sm:$0xf]
    %v315 = vld [vmem:[#allocation8 + $0x15c] sm:$0xff]
    %v316 = vld [vmem:[#allocation8 + $0x164] sm:$0xf]
    %v317 = vld [vmem:[#allocation8 + $0x168] sm:$0xff]
    %v318 = vld [vmem:[#allocation8 + $0x170] sm:$0xf]
    %v319 = vld [vmem:[#allocation8 + $0x174] sm:$0xff]
    %v320 = vld [vmem:[#allocation8 + $0x17c] sm:$0xf]
    %v321 = vld [vmem:[#allocation8 + $0x180] sm:$0xff]
    %v322 = vld [vmem:[#allocation8 + $0x188] sm:$0xf]
    %v323 = vld [vmem:[#allocation8 + $0x18c] sm:$0xff]
    %v324 = vld [vmem:[#allocation8 + $0x194] sm:$0xf]
    %v325 = vld [vmem:[#allocation8 + $0x198] sm:$0xff]
    %v326 = vld [vmem:[#allocation8 + $0x1a0] sm:$0xf]
    %v327 = vld [vmem:[#allocation8 + $0x1a4] sm:$0xff]
    %v328 = vld [vmem:[#allocation8 + $0x1ac] sm:$0xf]
    %v329 = vld [vmem:[#allocation8 + $0x1b0] sm:$0xff]
    %v330 = vld [vmem:[#allocation8 + $0x1b8] sm:$0xf]
    %v331 = vld [vmem:[#allocation8 + $0x1bc] sm:$0xff]
    %v332 = vld [vmem:[#allocation8 + $0x1c4] sm:$0xf]
    %v333 = vld [vmem:[#allocation8 + $0x1c8] sm:$0xff]
    %v334 = vld [vmem:[#allocation8 + $0x1d0] sm:$0xf]
    %v335 = vld [vmem:[#allocation8 + $0x1d4] sm:$0xff]
    %v336 = vld [vmem:[#allocation8 + $0x1dc] sm:$0xf]
    %v337 = vld [vmem:[#allocation8 + $0x1e0] sm:$0xff]
    %v338 = vld [vmem:[#allocation8 + $0x1e8] sm:$0xf]
    %v339 = vld [vmem:[#allocation8 + $0x1ec] sm:$0xff]
    %v340 = vld [vmem:[#allocation8 + $0x1f4] sm:$0xf]
    %v341 = vld [vmem:[#allocation8 + $0x1f8] sm:$0xff]
    %v342 = vld [vmem:[#allocation8 + $0x200] sm:$0xf]
    %v343 = vld [vmem:[#allocation8 + $0x204] sm:$0xff]
    %v344 = vld [vmem:[#allocation8 + $0x20c] sm:$0xf]
    %v345 = vld [vmem:[#allocation8 + $0x210] sm:$0xff]
    %v346 = vld [vmem:[#allocation8 + $0x218] sm:$0xf]
    %v347 = vld [vmem:[#allocation8 + $0x21c] sm:$0xff]
    %v348 = vld [vmem:[#allocation8 + $0x224] sm:$0xf]
    %v349 = vld [vmem:[#allocation8 + $0x228] sm:$0xff]
    %v350 = vld [vmem:[#allocation8 + $0x230] sm:$0xf]
    %v351 = vld [vmem:[#allocation8 + $0x234] sm:$0xff]
    %v352 = vld [vmem:[#allocation8 + $0x23c] sm:$0xf]
    %v353 = vld [vmem:[#allocation8 + $0x240] sm:$0xff]
    %v354 = vld [vmem:[#allocation8 + $0x248] sm:$0xf]
    %v355 = vld [vmem:[#allocation8 + $0x24c] sm:$0xff]
    %v356 = vld [vmem:[#allocation8 + $0x254] sm:$0xf]
    %v357 = vld [vmem:[#allocation8 + $0x258] sm:$0xff]
    %v358 = vld [vmem:[#allocation8 + $0x260] sm:$0xf]
    %v359 = vld [vmem:[#allocation8 + $0x264] sm:$0xff]
    %v360 = vld [vmem:[#allocation8 + $0x26c] sm:$0xf]
    %v361 = vld [vmem:[#allocation8 + $0x270] sm:$0xff]
    %v362 = vld [vmem:[#allocation8 + $0x278] sm:$0xf]
    %v363 = vld [vmem:[#allocation8 + $0x27c] sm:$0xff]
    %v364 = vld [vmem:[#allocation8 + $0x284] sm:$0xf]
    %v365 = vld [vmem:[#allocation8 + $0x288] sm:$0xff]
    %v366 = vld [vmem:[#allocation8 + $0x290] sm:$0xf]
    %v367 = vld [vmem:[#allocation8 + $0x294] sm:$0xff]
    %v368 = vld [vmem:[#allocation8 + $0x29c] sm:$0xf]
    %v369 = vld [vmem:[#allocation8 + $0x2a0] sm:$0xff]
    %v370 = vld [vmem:[#allocation8 + $0x2a8] sm:$0xf]
    %v371 = vld [vmem:[#allocation8 + $0x2ac] sm:$0xff]
    %v372 = vld [vmem:[#allocation8 + $0x2b4] sm:$0xf]
    %v373 = vld [vmem:[#allocation8 + $0x2b8] sm:$0xff]
    %v374 = vld [vmem:[#allocation8 + $0x2c0] sm:$0xf]
    %v375 = vld [vmem:[#allocation8 + $0x2c4] sm:$0xff]
    %v376 = vld [vmem:[#allocation8 + $0x2cc] sm:$0xf]
    %v377 = vld [vmem:[#allocation8 + $0x2d0] sm:$0xff]
    %v378 = vld [vmem:[#allocation8 + $0x2d8] sm:$0xf]
    %v379 = vld [vmem:[#allocation8 + $0x2dc] sm:$0xff]
    %v380 = vld [vmem:[#allocation8 + $0x2e4] sm:$0xf]
    %v381 = vld [vmem:[#allocation8 + $0x2e8] sm:$0xff]
    %v382 = vld [vmem:[#allocation8 + $0x2f0] sm:$0xf]
    %v383 = vld [vmem:[#allocation8 + $0x2f4] sm:$0xff]
    %v384 = vld [vmem:[#allocation8 + $0x2fc] sm:$0xf]
    %v385 = vld [vmem:[%s5] sm:$0x7]
    %v387 = vlaneseq
    %v388 = vshrl.u32 %v387, 7
    %v389 = vsub.s32 0, %v388
    %v390 = vrot.slane %v385, %v389
    %v391 = vlaneseq
    %v392 = vshrl.u32 %v391, 7
    %v393 = vsub.s32 1, %v392
    %v394 = vrot.slane %v385, %v393
    %v395 = vlaneseq
    %v396 = vshrl.u32 %v395, 7
    %v397 = vsub.s32 2, %v396
    %v398 = vrot.slane %v385, %v397
    %v530 = vunpack.c.l.b16 %v257
    %v531 = vunpack.c.h.b16 %v257
    %v532 = vunpack.c.l.b16 %v258
    %v533 = vunpack.c.l.b16 %v259
    %v534 = vunpack.c.h.b16 %v259
    %v535 = vunpack.c.l.b16 %v260
    %v536 = vunpack.c.l.b16 %v261
    %v537 = vunpack.c.h.b16 %v261
    %v538 = vunpack.c.l.b16 %v262
    %v539 = vunpack.c.l.b16 %v263
    %v540 = vunpack.c.h.b16 %v263
    %v541 = vunpack.c.l.b16 %v264
    %v542 = vunpack.c.l.b16 %v265
    %v543 = vunpack.c.h.b16 %v265
    %v544 = vunpack.c.l.b16 %v266
    %v545 = vunpack.c.l.b16 %v267
    %v546 = vunpack.c.h.b16 %v267
    %v547 = vunpack.c.l.b16 %v268
    %v548 = vunpack.c.l.b16 %v269
    %v549 = vunpack.c.h.b16 %v269
    %v550 = vunpack.c.l.b16 %v270
    %v551 = vunpack.c.l.b16 %v271
    %v552 = vunpack.c.h.b16 %v271
    %v553 = vunpack.c.l.b16 %v272
    %v554 = vunpack.c.l.b16 %v273
    %v555 = vunpack.c.h.b16 %v273
    %v556 = vunpack.c.l.b16 %v274
    %v557 = vunpack.c.l.b16 %v275
    %v558 = vunpack.c.h.b16 %v275
    %v559 = vunpack.c.l.b16 %v276
    %v560 = vunpack.c.l.b16 %v277
    %v561 = vunpack.c.h.b16 %v277
    %v562 = vunpack.c.l.b16 %v278
    %v563 = vunpack.c.l.b16 %v279
    %v564 = vunpack.c.h.b16 %v279
    %v565 = vunpack.c.l.b16 %v280
    %v566 = vunpack.c.l.b16 %v281
    %v567 = vunpack.c.h.b16 %v281
    %v568 = vunpack.c.l.b16 %v282
    %v569 = vunpack.c.l.b16 %v283
    %v570 = vunpack.c.h.b16 %v283
    %v571 = vunpack.c.l.b16 %v284
    %v572 = vunpack.c.l.b16 %v285
    %v573 = vunpack.c.h.b16 %v285
    %v574 = vunpack.c.l.b16 %v286
    %v575 = vunpack.c.l.b16 %v287
    %v576 = vunpack.c.h.b16 %v287
    %v577 = vunpack.c.l.b16 %v288
    %v578 = vunpack.c.l.b16 %v289
    %v579 = vunpack.c.h.b16 %v289
    %v580 = vunpack.c.l.b16 %v290
    %v581 = vunpack.c.l.b16 %v291
    %v582 = vunpack.c.h.b16 %v291
    %v583 = vunpack.c.l.b16 %v292
    %v584 = vunpack.c.l.b16 %v293
    %v585 = vunpack.c.h.b16 %v293
    %v586 = vunpack.c.l.b16 %v294
    %v587 = vunpack.c.l.b16 %v295
    %v588 = vunpack.c.h.b16 %v295
    %v589 = vunpack.c.l.b16 %v296
    %v590 = vunpack.c.l.b16 %v297
    %v591 = vunpack.c.h.b16 %v297
    %v592 = vunpack.c.l.b16 %v298
    %v593 = vunpack.c.l.b16 %v299
    %v594 = vunpack.c.h.b16 %v299
    %v595 = vunpack.c.l.b16 %v300
    %v596 = vunpack.c.l.b16 %v301
    %v597 = vunpack.c.h.b16 %v301
    %v598 = vunpack.c.l.b16 %v302
    %v599 = vunpack.c.l.b16 %v303
    %v600 = vunpack.c.h.b16 %v303
    %v601 = vunpack.c.l.b16 %v304
    %v602 = vunpack.c.l.b16 %v305
    %v603 = vunpack.c.h.b16 %v305
    %v604 = vunpack.c.l.b16 %v306
    %v605 = vunpack.c.l.b16 %v307
    %v606 = vunpack.c.h.b16 %v307
    %v607 = vunpack.c.l.b16 %v308
    %v608 = vunpack.c.l.b16 %v309
    %v609 = vunpack.c.h.b16 %v309
    %v610 = vunpack.c.l.b16 %v310
    %v611 = vunpack.c.l.b16 %v311
    %v612 = vunpack.c.h.b16 %v311
    %v613 = vunpack.c.l.b16 %v312
    %v614 = vunpack.c.l.b16 %v313
    %v615 = vunpack.c.h.b16 %v313
    %v616 = vunpack.c.l.b16 %v314
    %v617 = vunpack.c.l.b16 %v315
    %v618 = vunpack.c.h.b16 %v315
    %v619 = vunpack.c.l.b16 %v316
    %v620 = vunpack.c.l.b16 %v317
    %v621 = vunpack.c.h.b16 %v317
    %v622 = vunpack.c.l.b16 %v318
    %v623 = vunpack.c.l.b16 %v319
    %v624 = vunpack.c.h.b16 %v319
    %v625 = vunpack.c.l.b16 %v320
    %v626 = vunpack.c.l.b16 %v321
    %v627 = vunpack.c.h.b16 %v321
    %v628 = vunpack.c.l.b16 %v322
    %v629 = vunpack.c.l.b16 %v323
    %v630 = vunpack.c.h.b16 %v323
    %v631 = vunpack.c.l.b16 %v324
    %v632 = vunpack.c.l.b16 %v325
    %v633 = vunpack.c.h.b16 %v325
    %v634 = vunpack.c.l.b16 %v326
    %v635 = vunpack.c.l.b16 %v327
    %v636 = vunpack.c.h.b16 %v327
    %v637 = vunpack.c.l.b16 %v328
    %v638 = vunpack.c.l.b16 %v329
    %v639 = vunpack.c.h.b16 %v329
    %v640 = vunpack.c.l.b16 %v330
    %v641 = vunpack.c.l.b16 %v331
    %v642 = vunpack.c.h.b16 %v331
    %v643 = vunpack.c.l.b16 %v332
    %v644 = vunpack.c.l.b16 %v333
    %v645 = vunpack.c.h.b16 %v333
    %v646 = vunpack.c.l.b16 %v334
    %v647 = vunpack.c.l.b16 %v335
    %v648 = vunpack.c.h.b16 %v335
    %v649 = vunpack.c.l.b16 %v336
    %v650 = vunpack.c.l.b16 %v337
    %v651 = vunpack.c.h.b16 %v337
    %v652 = vunpack.c.l.b16 %v338
    %v653 = vunpack.c.l.b16 %v339
    %v654 = vunpack.c.h.b16 %v339
    %v655 = vunpack.c.l.b16 %v340
    %v656 = vunpack.c.l.b16 %v341
    %v657 = vunpack.c.h.b16 %v341
    %v658 = vunpack.c.l.b16 %v342
    %v659 = vunpack.c.l.b16 %v343
    %v660 = vunpack.c.h.b16 %v343
    %v661 = vunpack.c.l.b16 %v344
    %v662 = vunpack.c.l.b16 %v345
    %v663 = vunpack.c.h.b16 %v345
    %v664 = vunpack.c.l.b16 %v346
    %v665 = vunpack.c.l.b16 %v347
    %v666 = vunpack.c.h.b16 %v347
    %v667 = vunpack.c.l.b16 %v348
    %v668 = vunpack.c.l.b16 %v349
    %v669 = vunpack.c.h.b16 %v349
    %v670 = vunpack.c.l.b16 %v350
    %v671 = vunpack.c.l.b16 %v351
    %v672 = vunpack.c.h.b16 %v351
    %v673 = vunpack.c.l.b16 %v352
    %v674 = vunpack.c.l.b16 %v353
    %v675 = vunpack.c.h.b16 %v353
    %v676 = vunpack.c.l.b16 %v354
    %v677 = vunpack.c.l.b16 %v355
    %v678 = vunpack.c.h.b16 %v355
    %v679 = vunpack.c.l.b16 %v356
    %v680 = vunpack.c.l.b16 %v357
    %v681 = vunpack.c.h.b16 %v357
    %v682 = vunpack.c.l.b16 %v358
    %v683 = vunpack.c.l.b16 %v359
    %v684 = vunpack.c.h.b16 %v359
    %v685 = vunpack.c.l.b16 %v360
    %v686 = vunpack.c.l.b16 %v361
    %v687 = vunpack.c.h.b16 %v361
    %v688 = vunpack.c.l.b16 %v362
    %v689 = vunpack.c.l.b16 %v363
    %v690 = vunpack.c.h.b16 %v363
    %v691 = vunpack.c.l.b16 %v364
    %v692 = vunpack.c.l.b16 %v365
    %v693 = vunpack.c.h.b16 %v365
    %v694 = vunpack.c.l.b16 %v366
    %v695 = vunpack.c.l.b16 %v367
    %v696 = vunpack.c.h.b16 %v367
    %v697 = vunpack.c.l.b16 %v368
    %v698 = vunpack.c.l.b16 %v369
    %v699 = vunpack.c.h.b16 %v369
    %v700 = vunpack.c.l.b16 %v370
    %v701 = vunpack.c.l.b16 %v371
    %v702 = vunpack.c.h.b16 %v371
    %v703 = vunpack.c.l.b16 %v372
    %v704 = vunpack.c.l.b16 %v373
    %v705 = vunpack.c.h.b16 %v373
    %v706 = vunpack.c.l.b16 %v374
    %v707 = vunpack.c.l.b16 %v375
    %v708 = vunpack.c.h.b16 %v375
    %v709 = vunpack.c.l.b16 %v376
    %v710 = vunpack.c.l.b16 %v377
    %v711 = vunpack.c.h.b16 %v377
    %v712 = vunpack.c.l.b16 %v378
    %v713 = vunpack.c.l.b16 %v379
    %v714 = vunpack.c.h.b16 %v379
    %v715 = vunpack.c.l.b16 %v380
    %v716 = vunpack.c.l.b16 %v381
    %v717 = vunpack.c.h.b16 %v381
    %v718 = vunpack.c.l.b16 %v382
    %v719 = vunpack.c.l.b16 %v383
    %v720 = vunpack.c.h.b16 %v383
    %v721 = vunpack.c.l.b16 %v384
    %v722 = vpack.c.b16 %v533, %v530
    %v723 = vpack.c.b16 %v534, %v531
    %v724 = vpack.c.b16 %v535, %v532
    %v725 = vpack.c.b16 %v539, %v536
    %v726 = vpack.c.b16 %v540, %v537
    %v727 = vpack.c.b16 %v541, %v538
    %v728 = vpack.c.b16 %v545, %v542
    %v729 = vpack.c.b16 %v546, %v543
    %v730 = vpack.c.b16 %v547, %v544
    %v731 = vpack.c.b16 %v551, %v548
    %v732 = vpack.c.b16 %v552, %v549
    %v733 = vpack.c.b16 %v553, %v550
    %v734 = vpack.c.b16 %v557, %v554
    %v735 = vpack.c.b16 %v558, %v555
    %v736 = vpack.c.b16 %v559, %v556
    %v737 = vpack.c.b16 %v563, %v560
    %v738 = vpack.c.b16 %v564, %v561
    %v739 = vpack.c.b16 %v565, %v562
    %v740 = vpack.c.b16 %v569, %v566
    %v741 = vpack.c.b16 %v570, %v567
    %v742 = vpack.c.b16 %v571, %v568
    %v743 = vpack.c.b16 %v575, %v572
    %v744 = vpack.c.b16 %v576, %v573
    %v745 = vpack.c.b16 %v577, %v574
    %v746 = vpack.c.b16 %v581, %v578
    %v747 = vpack.c.b16 %v582, %v579
    %v748 = vpack.c.b16 %v583, %v580
    %v749 = vpack.c.b16 %v587, %v584
    %v750 = vpack.c.b16 %v588, %v585
    %v751 = vpack.c.b16 %v589, %v586
    %v752 = vpack.c.b16 %v593, %v590
    %v753 = vpack.c.b16 %v594, %v591
    %v754 = vpack.c.b16 %v595, %v592
    %v755 = vpack.c.b16 %v599, %v596
    %v756 = vpack.c.b16 %v600, %v597
    %v757 = vpack.c.b16 %v601, %v598
    %v758 = vpack.c.b16 %v605, %v602
    %v759 = vpack.c.b16 %v606, %v603
    %v760 = vpack.c.b16 %v607, %v604
    %v761 = vpack.c.b16 %v611, %v608
    %v762 = vpack.c.b16 %v612, %v609
    %v763 = vpack.c.b16 %v613, %v610
    %v764 = vpack.c.b16 %v617, %v614
    %v765 = vpack.c.b16 %v618, %v615
    %v766 = vpack.c.b16 %v619, %v616
    %v767 = vpack.c.b16 %v623, %v620
    %v768 = vpack.c.b16 %v624, %v621
    %v769 = vpack.c.b16 %v625, %v622
    %v770 = vpack.c.b16 %v629, %v626
    %v771 = vpack.c.b16 %v630, %v627
    %v772 = vpack.c.b16 %v631, %v628
    %v773 = vpack.c.b16 %v635, %v632
    %v774 = vpack.c.b16 %v636, %v633
    %v775 = vpack.c.b16 %v637, %v634
    %v776 = vpack.c.b16 %v641, %v638
    %v777 = vpack.c.b16 %v642, %v639
    %v778 = vpack.c.b16 %v643, %v640
    %v779 = vpack.c.b16 %v647, %v644
    %v780 = vpack.c.b16 %v648, %v645
    %v781 = vpack.c.b16 %v649, %v646
    %v782 = vpack.c.b16 %v653, %v650
    %v783 = vpack.c.b16 %v654, %v651
    %v784 = vpack.c.b16 %v655, %v652
    %v785 = vpack.c.b16 %v659, %v656
    %v786 = vpack.c.b16 %v660, %v657
    %v787 = vpack.c.b16 %v661, %v658
    %v788 = vpack.c.b16 %v665, %v662
    %v789 = vpack.c.b16 %v666, %v663
    %v790 = vpack.c.b16 %v667, %v664
    %v791 = vpack.c.b16 %v671, %v668
    %v792 = vpack.c.b16 %v672, %v669
    %v793 = vpack.c.b16 %v673, %v670
    %v794 = vpack.c.b16 %v677, %v674
    %v795 = vpack.c.b16 %v678, %v675
    %v796 = vpack.c.b16 %v679, %v676
    %v797 = vpack.c.b16 %v683, %v680
    %v798 = vpack.c.b16 %v684, %v681
    %v799 = vpack.c.b16 %v685, %v682
    %v800 = vpack.c.b16 %v689, %v686
    %v801 = vpack.c.b16 %v690, %v687
    %v802 = vpack.c.b16 %v691, %v688
    %v803 = vpack.c.b16 %v695, %v692
    %v804 = vpack.c.b16 %v696, %v693
    %v805 = vpack.c.b16 %v697, %v694
    %v806 = vpack.c.b16 %v701, %v698
    %v807 = vpack.c.b16 %v702, %v699
    %v808 = vpack.c.b16 %v703, %v700
    %v809 = vpack.c.b16 %v707, %v704
    %v810 = vpack.c.b16 %v708, %v705
    %v811 = vpack.c.b16 %v709, %v706
    %v812 = vpack.c.b16 %v713, %v710
    %v813 = vpack.c.b16 %v714, %v711
    %v814 = vpack.c.b16 %v715, %v712
    %v815 = vpack.c.b16 %v719, %v716
    %v816 = vpack.c.b16 %v720, %v717
    %v817 = vpack.c.b16 %v721, %v718
    %914 = vmatprep.subr.bf16.mxu0 %v723
    %915 = vmatpush1.bf16.msra.mxu0 %v722
    %916 = vmatprep.subr.bf16.mxu0 %v726
    %917 = vmatpush1.bf16.msra.mxu0 %v725
    %918 = vmatprep.subr.bf16.mxu0 %v729
    %919 = vmatpush1.bf16.msra.mxu0 %v728
    %920 = vmatprep.subr.bf16.mxu0 %v732
    %921 = vmatpush1.bf16.msra.mxu0 %v731
    %922 = vmatprep.subr.bf16.mxu0 %v735
    %923 = vmatpush1.bf16.msra.mxu0 %v734
    %924 = vmatprep.subr.bf16.mxu0 %v738
    %925 = vmatpush1.bf16.msra.mxu0 %v737
    %926 = vmatprep.subr.bf16.mxu0 %v741
    %927 = vmatpush1.bf16.msra.mxu0 %v740
    %928 = vmatprep.subr.bf16.mxu0 %v744
    %929 = vmatpush1.bf16.msra.mxu0 %v743
    %930 = vmatprep.subr.bf16.mxu0 %v747
    %931 = vmatpush1.bf16.msra.mxu0 %v746
    %932 = vmatprep.subr.bf16.mxu0 %v750
    %933 = vmatpush1.bf16.msra.mxu0 %v749
    %934 = vmatprep.subr.bf16.mxu0 %v753
    %935 = vmatpush1.bf16.msra.mxu0 %v752
    %936 = vmatprep.subr.bf16.mxu0 %v756
    %937 = vmatpush1.bf16.msra.mxu0 %v755
    %938 = vmatprep.subr.bf16.mxu0 %v759
    %939 = vmatpush1.bf16.msra.mxu0 %v758
    %940 = vmatprep.subr.bf16.mxu0 %v762
    %941 = vmatpush1.bf16.msra.mxu0 %v761
    %942 = vmatprep.subr.bf16.mxu0 %v765
    %943 = vmatpush1.bf16.msra.mxu0 %v764
    %944 = vmatprep.subr.bf16.mxu0 %v768
    %945 = vmatpush1.bf16.msra.mxu0 %v767
    %946 = vmatprep.mubr.bf16.mxu0 %v254
    %947 = vmatmul.mubr.bf16.gmra.mrb[0].mxu0 %v253
    %v948 = vpop.f32.mrb[0].mxu0
    %v949 = vadd.f32 %v390, %v948
    %v950 = vpop.f32.mrb[0].mxu0
    %v951 = vadd.f32 %v394, %v950
    %v952 = vpop.f32.mrb[0].mxu0
    %v953 = vpop.f32.mrb[0].mxu0
    %954 = vdwg.mxu0
    %955 = vmatprep.subr.bf16.mxu0 %v771
    %956 = vmatpush1.bf16.msra.mxu0 %v770
    %957 = vmatprep.subr.bf16.mxu0 %v774
    %958 = vmatpush1.bf16.msra.mxu0 %v773
    %959 = vmatprep.subr.bf16.mxu0 %v777
    %960 = vmatpush1.bf16.msra.mxu0 %v776
    %961 = vmatprep.subr.bf16.mxu0 %v780
    %962 = vmatpush1.bf16.msra.mxu0 %v779
    %963 = vmatprep.subr.bf16.mxu0 %v783
    %964 = vmatpush1.bf16.msra.mxu0 %v782
    %965 = vmatprep.subr.bf16.mxu0 %v786
    %966 = vmatpush1.bf16.msra.mxu0 %v785
    %967 = vmatprep.subr.bf16.mxu0 %v789
    %968 = vmatpush1.bf16.msra.mxu0 %v788
    %969 = vmatprep.subr.bf16.mxu0 %v792
    %970 = vmatpush1.bf16.msra.mxu0 %v791
    %971 = vmatprep.subr.bf16.mxu0 %v795
    %972 = vmatpush1.bf16.msra.mxu0 %v794
    %973 = vmatprep.subr.bf16.mxu0 %v798
    %974 = vmatpush1.bf16.msra.mxu0 %v797
    %975 = vmatprep.subr.bf16.mxu0 %v801
    %976 = vmatpush1.bf16.msra.mxu0 %v800
    %977 = vmatprep.subr.bf16.mxu0 %v804
    %978 = vmatpush1.bf16.msra.mxu0 %v803
    %979 = vmatprep.subr.bf16.mxu0 %v807
    %980 = vmatpush1.bf16.msra.mxu0 %v806
    %981 = vmatprep.subr.bf16.mxu0 %v810
    %982 = vmatpush1.bf16.msra.mxu0 %v809
    %983 = vmatprep.subr.bf16.mxu0 %v813
    %984 = vmatpush1.bf16.msra.mxu0 %v812
    %985 = vmatprep.subr.bf16.mxu0 %v816
    %986 = vmatpush1.bf16.msra.mxu0 %v815
    %987 = vmatprep.mubr.bf16.mxu0 %v256
    %988 = vmatmul.mubr.bf16.gmra.mrb[0].mxu0 %v255
    %v989 = vpop.f32.mrb[0].mxu0
    %v990 = vadd.f32 %v949, %v989
    %v991 = vpop.f32.mrb[0].mxu0
    %v992 = vadd.f32 %v951, %v991
    %v993 = vpop.f32.mrb[0].mxu0
    %v994 = vpop.f32.mrb[0].mxu0
    %995 = vdwg.mxu0
    %996 = vmatprep.subr.bf16.mxu0 0
    %997 = vmatpush1.bf16.msra.mxu0 %v724
    %998 = vmatprep.subr.bf16.mxu0 0
    %999 = vmatpush1.bf16.msra.mxu0 %v727
    %1000 = vmatprep.subr.bf16.mxu0 0
    %1001 = vmatpush1.bf16.msra.mxu0 %v730
    %1002 = vmatprep.subr.bf16.mxu0 0
    %1003 = vmatpush1.bf16.msra.mxu0 %v733
    %1004 = vmatprep.subr.bf16.mxu0 0
    %1005 = vmatpush1.bf16.msra.mxu0 %v736
    %1006 = vmatprep.subr.bf16.mxu0 0
    %1007 = vmatpush1.bf16.msra.mxu0 %v739
    %1008 = vmatprep.subr.bf16.mxu0 0
    %1009 = vmatpush1.bf16.msra.mxu0 %v742
    %1010 = vmatprep.subr.bf16.mxu0 0
    %1011 = vmatpush1.bf16.msra.mxu0 %v745
    %1012 = vmatprep.subr.bf16.mxu0 0
    %1013 = vmatpush1.bf16.msra.mxu0 %v748
    %1014 = vmatprep.subr.bf16.mxu0 0
    %1015 = vmatpush1.bf16.msra.mxu0 %v751
    %1016 = vmatprep.subr.bf16.mxu0 0
    %1017 = vmatpush1.bf16.msra.mxu0 %v754
    %1018 = vmatprep.subr.bf16.mxu0 0
    %1019 = vmatpush1.bf16.msra.mxu0 %v757
    %1020 = vmatprep.subr.bf16.mxu0 0
    %1021 = vmatpush1.bf16.msra.mxu0 %v760
    %1022 = vmatprep.subr.bf16.mxu0 0
    %1023 = vmatpush1.bf16.msra.mxu0 %v763
    %1024 = vmatprep.subr.bf16.mxu0 0
    %1025 = vmatpush1.bf16.msra.mxu0 %v766
    %1026 = vmatprep.subr.bf16.mxu0 0
    %1027 = vmatpush1.bf16.msra.mxu0 %v769
    %1028 = vmatprep.mubr.bf16.mxu0 %v254
    %1029 = vmatmul.mubr.bf16.gmra.mrb[0].mxu0 %v253
    %v1030 = vpop.f32.mrb[0].mxu0
    %v1031 = vadd.f32 %v398, %v1030
    %v1032 = vpop.f32.mrb[0].mxu0
    %v1033 = vpop.f32.mrb[0].mxu0
    %v1034 = vpop.f32.mrb[0].mxu0
    %1035 = vdwg.mxu0
    %1036 = vmatprep.subr.bf16.mxu0 0
    %1037 = vmatpush1.bf16.msra.mxu0 %v772
    %1038 = vmatprep.subr.bf16.mxu0 0
    %1039 = vmatpush1.bf16.msra.mxu0 %v775
    %1040 = vmatprep.subr.bf16.mxu0 0
    %1041 = vmatpush1.bf16.msra.mxu0 %v778
    %1042 = vmatprep.subr.bf16.mxu0 0
    %1043 = vmatpush1.bf16.msra.mxu0 %v781
    %1044 = vmatprep.subr.bf16.mxu0 0
    %1045 = vmatpush1.bf16.msra.mxu0 %v784
    %1046 = vmatprep.subr.bf16.mxu0 0
    %1047 = vmatpush1.bf16.msra.mxu0 %v787
    %1048 = vmatprep.subr.bf16.mxu0 0
    %1049 = vmatpush1.bf16.msra.mxu0 %v790
    %1050 = vmatprep.subr.bf16.mxu0 0
    %1051 = vmatpush1.bf16.msra.mxu0 %v793
    %1052 = vmatprep.subr.bf16.mxu0 0
    %1053 = vmatpush1.bf16.msra.mxu0 %v796
    %1054 = vmatprep.subr.bf16.mxu0 0
    %1055 = vmatpush1.bf16.msra.mxu0 %v799
    %1056 = vmatprep.subr.bf16.mxu0 0
    %1057 = vmatpush1.bf16.msra.mxu0 %v802
    %1058 = vmatprep.subr.bf16.mxu0 0
    %1059 = vmatpush1.bf16.msra.mxu0 %v805
    %1060 = vmatprep.subr.bf16.mxu0 0
    %1061 = vmatpush1.bf16.msra.mxu0 %v808
    %1062 = vmatprep.subr.bf16.mxu0 0
    %1063 = vmatpush1.bf16.msra.mxu0 %v811
    %1064 = vmatprep.subr.bf16.mxu0 0
    %1065 = vmatpush1.bf16.msra.mxu0 %v814
    %1066 = vmatprep.subr.bf16.mxu0 0
    %1067 = vmatpush1.bf16.msra.mxu0 %v817
    %1068 = vmatprep.mubr.bf16.mxu0 %v256
    %1069 = vmatmul.mubr.bf16.gmra.mrb[0].mxu0 %v255
    %v1070 = vpop.f32.mrb[0].mxu0
    %v1071 = vadd.f32 %v1031, %v1070
    %v1072 = vpop.f32.mrb[0].mxu0
    %v1073 = vpop.f32.mrb[0].mxu0
    %v1074 = vpop.f32.mrb[0].mxu0
    %1075 = vdwg.mxu0
    %v1076 = vmax.f32 %v990, 0.0
    %v1077 = vmax.f32 %v992, 0.0
    %v1078 = vmax.f32 %v1071, 0.0
    %v1079 = vld [vmem:[%s6] sm:$0x7]
    %v1081 = vlaneseq
    %v1082 = vshrl.u32 %v1081, 7
    %v1083 = vsub.s32 0, %v1082
    %v1084 = vrot.slane %v1079, %v1083
    %v1085 = vlaneseq
    %v1086 = vshrl.u32 %v1085, 7
    %v1087 = vsub.s32 1, %v1086
    %v1088 = vrot.slane %v1079, %v1087
    %v1089 = vlaneseq
    %v1090 = vshrl.u32 %v1089, 7
    %v1091 = vsub.s32 2, %v1090
    %v1092 = vrot.slane %v1079, %v1091
    %v1096 = vmul.f32 %v1076, %v1084
    %v1097 = vmul.f32 %v1077, %v1088
    %v1098 = vmul.f32 %v1078, %v1092
    %v1099 = vadd.f32 %v1096, %v1097
    %v1100 = vadd.f32 %v1099, %v1098
    %1101 = vadd.xlane.f32.xlu0 %v1100
    %v1102 = vpop.xlane.xlu0 %1101
    %v1103 = vld [vmem:[#allocation2] sm:$0x1]
    %v1105 = vlaneseq
    %v1106 = vshrl.u32 %v1105, 7
    %v1107 = vsub.s32 0, %v1106
    %v1108 = vrot.slane %v1103, %v1107
    %v1110 = vadd.f32 %v1102, %v1108
    %vm1111 = vcmask 7168
    %1112 = vst.msk [vmem:[%s8] sm:$0xff] %vm1111, %v1110
    // Predicated region
    $region50: #{tpu_custom_call.1} parent=1 // pred_check
      _
    $region51: #{tpu_custom_call.1} parent=1 // pred_check_branch
      %1114 = sbr.rel (0) target = $region53
    $region52: #{tpu_custom_call.1} parent=1 // pred_region
      _
    $region53: #{tpu_custom_call.1} parent=1 // pred_fallthru
      _
    // Predicated region
    $region54: #{tpu_custom_call.1} parent=1 // pred_check
      _
    $region55: #{tpu_custom_call.1} parent=1 // pred_check_branch
      %1116 = sbr.rel (0) target = $region57
    $region56: #{tpu_custom_call.1} parent=1 // pred_region
      _
    $region57: #{tpu_custom_call.1} parent=1 // pred_fallthru
      _
    %1117 = vsyncpa [#allocation4], 1
    %1118 = vsyncpa [#allocation6], 1
    %1119 = vsyncpa [#allocation9], 1

</llo_original>
